<compile_context>
chip_gen: v7x
topology: tpu7x:2x2x1
jax: 0.10.0
libtpu: 0.0.40
codegen_flags: <defaults>
</compile_context>

<pallas_src>
import functools

import jax
import jax.numpy as jnp
import numpy as np
from jax.experimental import pallas as pl
from jax.experimental.pallas import tpu as pltpu


# ----------------------------- Pallas kernel -------------------------------

def svm_wrapper_kernel(patch_ref, w_ref, pool_ref, svtg_ref, wpd_ref, eij_ref,
                       vec_ref, out_ref, *, gamma, oc, m, n_pairs, n_classes):
    """Fused conv-matmul + ReLU + avg-pool + RBF SVC ovo + ovr, whole batch."""
    # ---- unpack the single packed row-constant vector (static lane slices)
    vec = vec_ref[...]                                   # (1, 62)
    b_row = vec[:, 0:oc]                                 # (1, OC)  conv bias
    svn2g = vec[:, oc:oc + m]                            # (1, M)   -gamma*|sv|^2
    icpt_iba = vec[:, oc + m:oc + m + n_pairs + n_classes]        # (1, P+C)
    ejsum = vec[:, oc + m + n_pairs + n_classes:
                   oc + m + n_pairs + 2 * n_classes]              # (1, C)

    # ---- feature extractor: relu(patches @ W + b) for the whole batch
    y = jnp.dot(patch_ref[...], w_ref[...],
                preferred_element_type=jnp.float32)      # (N*R, OC)
    y = jnp.maximum(y + b_row, 0.0)

    # ---- per-sample global average pool as an MXU matmul (block-diag 1/R)
    feat = jnp.dot(pool_ref[...], y,
                   preferred_element_type=jnp.float32)   # (N, OC)

    # ---- RBF kernel matrix, gamma pre-folded into svtg / svn2g
    x2 = jnp.sum(feat * feat, axis=-1, keepdims=True)    # (N, 1)
    xs = jnp.dot(feat, svtg_ref[...],
                 preferred_element_type=jnp.float32)     # (N, M) = 2*g*x.sv
    kmat = jnp.exp(xs + svn2g - gamma * x2)              # (N, M)

    # ---- fused ovo decisions + confidence accumulation: one matmul [wp|wpa]
    dd = jnp.dot(kmat, wpd_ref[...],
                 preferred_element_type=jnp.float32) + icpt_iba   # (N, P+C)
    dec = dd[:, 0:n_pairs]                                # (N, P) ovo decisions
    sum_conf = -dd[:, n_pairs:n_pairs + n_classes]        # (N, C) = (-dec) @ a

    # ---- sklearn _ovr_decision_function (folded form)
    pos = (dec >= 0.0).astype(jnp.float32)                # vote for class i
    votes = jnp.dot(pos, eij_ref[...],
                    preferred_element_type=jnp.float32) + ejsum   # (N, C)
    out_ref[...] = votes + sum_conf / (3.0 * (jnp.abs(sum_conf) + 1.0))


# ------------------------------ Wrapper -------------------------------------

def fused_forward(patches2, w_mat, pool_mat, svtg, wpd, eij, vec,
                  gamma, n, n_classes, oc, m, n_pairs):
    def full(a):
        nd = a.ndim
        return pl.BlockSpec(a.shape, lambda i, nd=nd: (0,) * nd)

    kern = functools.partial(svm_wrapper_kernel, gamma=gamma, oc=oc, m=m,
                             n_pairs=n_pairs, n_classes=n_classes)
    return pl.pallas_call(
        kern,
        out_shape=jax.ShapeDtypeStruct((n, n_classes), jnp.float32),
        grid=(1,),
        in_specs=[full(patches2), full(w_mat), full(pool_mat), full(svtg),
                  full(wpd), full(eij), full(vec)],
        out_specs=pl.BlockSpec((n, n_classes), lambda i: (0, 0)),
        compiler_params=pltpu.CompilerParams(
            dimension_semantics=("arbitrary",)),
    )(patches2, w_mat, pool_mat, svtg, wpd, eij, vec)


# ------------------------------ Glue / setup --------------------------------

def im2col_nhwc(x_nchw, kh, kw):
    """x: (N, C, H, W) -> patches (N, OH*OW, kh*kw*C) with (di, dj, c) order."""
    n, c, h, w = x_nchw.shape
    oh, ow = h - kh + 1, w - kw + 1
    xh = jnp.transpose(x_nchw, (0, 2, 3, 1))  # NHWC
    cols = [xh[:, di:di + oh, dj:dj + ow, :]
            for di in range(kh) for dj in range(kw)]
    patches = jnp.concatenate(cols, axis=-1).reshape(n, oh * ow, kh * kw * c)
    return patches, oh, ow


def build_pair_matrices(n_classes, n_sv_per_class, dual_coef, n_pairs):
    """libsvm ovo coefficient layout -> per-pair SV weights + ovr helpers (numpy)."""
    m = n_classes * n_sv_per_class
    starts = [k * n_sv_per_class for k in range(n_classes)]
    wp = np.zeros((m, n_pairs), np.float32)              # K @ wp -> ovo decisions
    a_mat = np.zeros((n_pairs, n_classes), np.float32)   # confidence accumulation
    ei = np.zeros((n_pairs, n_classes), np.float32)      # vote for i
    ej = np.zeros((n_pairs, n_classes), np.float32)      # vote for j
    k = 0
    for i in range(n_classes):
        for j in range(i + 1, n_classes):
            si, sj = starts[i], starts[j]
            wp[si:si + n_sv_per_class, k] = dual_coef[j - 1, si:si + n_sv_per_class]
            wp[sj:sj + n_sv_per_class, k] = dual_coef[i, sj:sj + n_sv_per_class]
            a_mat[k, i], a_mat[k, j] = -1.0, 1.0
            ei[k, i], ej[k, j] = 1.0, 1.0
            k += 1
    return wp, a_mat, ei, ej


# ------------------------------ Reference -----------------------------------

def reference_forward(x, w_conv, b_conv, sv, dual_coef, intercepts,
                      n_classes, n_sv_per_class, gamma, kh=3, kw=3):
    patches, oh, ow = im2col_nhwc(x, kh, kw)
    w_mat = jnp.transpose(w_conv, (2, 3, 1, 0)).reshape(kh * kw * x.shape[1], -1)
    y = jnp.maximum(jnp.einsum('nrk,ko->nro', patches, w_mat)
                    + b_conv[None, None, :], 0.0)
    feats = y.mean(axis=1)
    d2 = (jnp.sum(feats ** 2, -1, keepdims=True) + jnp.sum(sv ** 2, -1)[None, :]
          - 2.0 * feats @ sv.T)
    kmat = jnp.exp(-gamma * d2)
    wp, a_mat, ei, ej = build_pair_matrices(
        n_classes, n_sv_per_class, np.asarray(dual_coef), intercepts.shape[0])
    dec = kmat @ wp + intercepts[None, :]
    conf = -dec
    sum_conf = conf @ a_mat
    pos = (dec >= 0.0).astype(jnp.float32)
    votes = pos @ ei + (1.0 - pos) @ ej
    return votes + sum_conf / (3.0 * (jnp.abs(sum_conf) + 1.0))


# --------------------------------- Main --------------------------------------

if __name__ == "__main__":
    key = jax.random.PRNGKey(0)
    k1, k2, k3, k4, k5, k6 = jax.random.split(key, 6)

    # Small shapes consistent with the module (NCHW conv input).
    N, C_IN, H, W = 2, 4, 16, 16
    KH = KW = 3
    OC = 32                        # feature dim produced by model_conv
    N_CLASSES = 4
    N_SV_PER_CLASS = 4
    M = N_CLASSES * N_SV_PER_CLASS
    N_PAIRS = N_CLASSES * (N_CLASSES - 1) // 2
    GAMMA = 1.0 / OC

    # Deterministic "frozen" conv feature-extractor params.
    w_conv = 0.1 * jax.random.normal(k1, (OC, C_IN, KH, KW), jnp.float32)
    b_conv = 0.05 * jax.random.normal(k2, (OC,), jnp.float32)

    # Deterministic synthetic "fitted" SVC parameters (ovo, rbf).
    # TODO(synk): sklearn SVC training (clf.fit) has no Pallas equivalent;
    # only the decision_function inference path is implemented.
    sv = jax.random.normal(k3, (M, OC), jnp.float32)            # support vectors
    dual_coef = jax.random.normal(k4, (N_CLASSES - 1, M), jnp.float32)
    intercepts = 0.1 * jax.random.normal(k5, (N_PAIRS,), jnp.float32)

    # Example input (what DataLoader would yield): NCHW image batch.
    x = jax.random.normal(k6, (N, C_IN, H, W), jnp.float32)

    # ---- one-time host precompute of fused model constants ----
    w_mat = jnp.transpose(w_conv, (2, 3, 1, 0)).reshape(KH * KW * C_IN, OC)

    wp_np, a_np, ei_np, ej_np = build_pair_matrices(
        N_CLASSES, N_SV_PER_CLASS, np.asarray(dual_coef), N_PAIRS)
    sv_np = np.asarray(sv, np.float32)
    icpt_np = np.asarray(intercepts, np.float32)[None, :]         # (1, P)

    svtg = jnp.asarray((2.0 * GAMMA) * sv_np.T, jnp.float32)      # (OC, M)
    svn2g_np = (-GAMMA * np.sum(sv_np * sv_np, -1))[None, :]      # (1, M)
    wpd = jnp.asarray(np.concatenate([wp_np, wp_np @ a_np], axis=1),
                      jnp.float32)                                # (M, P+C)
    icpt_iba_np = np.concatenate([icpt_np, icpt_np @ a_np], axis=1)  # (1, P+C)
    eij = jnp.asarray(ei_np - ej_np, jnp.float32)                 # (P, C)
    ejsum_np = np.sum(ej_np, axis=0, keepdims=True)               # (1, C)

    # Packed row constants: [b_row | svn2g | icpt_iba | ejsum]  -> (1, 62)
    vec = jnp.asarray(np.concatenate(
        [np.asarray(b_conv, np.float32)[None, :], svn2g_np.astype(np.float32),
         icpt_iba_np.astype(np.float32), ejsum_np.astype(np.float32)],
        axis=1), jnp.float32)

    # ---- im2col on host (cheap XLA fusion), then one fused Pallas call ----
    patches3, OH, OW = im2col_nhwc(x, KH, KW)                     # (N, R, K)
    R = OH * OW
    patches2 = patches3.reshape(N * R, KH * KW * C_IN)            # (N*R, K)

    # Block-diagonal per-sample mean-pool matrix (N, N*R) of 1/R entries.
    pool_np = np.zeros((N, N * R), np.float32)
    for i in range(N):
        pool_np[i, i * R:(i + 1) * R] = 1.0 / R
    pool_mat = jnp.asarray(pool_np)

    out = fused_forward(patches2, w_mat, pool_mat, svtg, wpd, eij, vec,
                        GAMMA, N, N_CLASSES, OC, M, N_PAIRS)      # (N, C)
    out = jax.block_until_ready(out)

    ref = jax.block_until_ready(reference_forward(
        x, w_conv, b_conv, sv, dual_coef, intercepts,
        N_CLASSES, N_SV_PER_CLASS, GAMMA))

    np.testing.assert_allclose(np.asarray(out), np.asarray(ref),
                               rtol=1e-4, atol=1e-4)
    print("KERNEL_OK")
</pallas_src>

<mosaic_0001>
module attributes {stable_mosaic.version = 11 : i64} {
  func.func @svm_wrapper_kernel(%arg0: i32, %arg1: memref<392x36xf32, #tpu.memory_space<vmem>>, %arg2: memref<36x32xf32, #tpu.memory_space<vmem>>, %arg3: memref<2x392xf32, #tpu.memory_space<vmem>>, %arg4: memref<32x16xf32, #tpu.memory_space<vmem>>, %arg5: memref<16x10xf32, #tpu.memory_space<vmem>>, %arg6: memref<6x4xf32, #tpu.memory_space<vmem>>, %arg7: memref<1x62xf32, #tpu.memory_space<vmem>>, %arg8: memref<2x4xf32, #tpu.memory_space<vmem>>) attributes {dimension_semantics = [#tpu.dimension_semantics<arbitrary>], iteration_bounds = array<i64: 1>, scalar_prefetch = 0 : i64, scratch_operands = 0 : i64, tpu.core_type = #tpu.core_type<tc>, window_params = [{pipeline_mode = #tpu.pipeline_mode<synchronous>, transform_indices = @transform_0, window_bounds = array<i64: 392, 36>}, {pipeline_mode = #tpu.pipeline_mode<synchronous>, transform_indices = @transform_1, window_bounds = array<i64: 36, 32>}, {pipeline_mode = #tpu.pipeline_mode<synchronous>, transform_indices = @transform_2, window_bounds = array<i64: 2, 392>}, {pipeline_mode = #tpu.pipeline_mode<synchronous>, transform_indices = @transform_3, window_bounds = array<i64: 32, 16>}, {pipeline_mode = #tpu.pipeline_mode<synchronous>, transform_indices = @transform_4, window_bounds = array<i64: 16, 10>}, {pipeline_mode = #tpu.pipeline_mode<synchronous>, transform_indices = @transform_5, window_bounds = array<i64: 6, 4>}, {pipeline_mode = #tpu.pipeline_mode<synchronous>, transform_indices = @transform_6, window_bounds = array<i64: 1, 62>}, {pipeline_mode = #tpu.pipeline_mode<synchronous>, transform_indices = @transform_7, window_bounds = array<i64: 2, 4>}]} {
    %c0 = arith.constant 0 : index
    %c0_0 = arith.constant 0 : index
    %0 = vector.load %arg7[%c0, %c0_0] : memref<1x62xf32, #tpu.memory_space<vmem>>, vector<1x62xf32>
    %1 = vector.extract_strided_slice %0 {offsets = [0, 0], sizes = [1, 32], strides = [1, 1]} : vector<1x62xf32> to vector<1x32xf32>
    %2 = vector.extract_strided_slice %0 {offsets = [0, 32], sizes = [1, 16], strides = [1, 1]} : vector<1x62xf32> to vector<1x16xf32>
    %3 = vector.extract_strided_slice %0 {offsets = [0, 48], sizes = [1, 10], strides = [1, 1]} : vector<1x62xf32> to vector<1x10xf32>
    %4 = vector.extract_strided_slice %0 {offsets = [0, 58], sizes = [1, 4], strides = [1, 1]} : vector<1x62xf32> to vector<1x4xf32>
    %c0_1 = arith.constant 0 : index
    %c0_2 = arith.constant 0 : index
    %5 = vector.load %arg1[%c0_1, %c0_2] : memref<392x36xf32, #tpu.memory_space<vmem>>, vector<392x36xf32>
    %c0_3 = arith.constant 0 : index
    %c0_4 = arith.constant 0 : index
    %6 = vector.load %arg2[%c0_3, %c0_4] : memref<36x32xf32, #tpu.memory_space<vmem>>, vector<36x32xf32>
    %cst = arith.constant dense<0.000000e+00> : vector<392x32xf32>
    %7 = tpu.matmul %5, %6, %cst {dimension_numbers = #tpu.dot_dimension_numbers<[1], [0], [0], [1], [0, 0, 1, 1], [], []>} : vector<392x36xf32>, vector<36x32xf32>, vector<392x32xf32> -> vector<392x32xf32>
    %8 = vector.broadcast %1 : vector<1x32xf32> to vector<392x32xf32>
    %9 = arith.addf %7, %8 : vector<392x32xf32>
    %cst_5 = arith.constant 0.000000e+00 : f32
    %10 = vector.broadcast %cst_5 : f32 to vector<392x32xf32>
    %11 = arith.maximumf %9, %10 : vector<392x32xf32>
    %c0_6 = arith.constant 0 : index
    %c0_7 = arith.constant 0 : index
    %12 = vector.load %arg3[%c0_6, %c0_7] : memref<2x392xf32, #tpu.memory_space<vmem>>, vector<2x392xf32>
    %cst_8 = arith.constant dense<0.000000e+00> : vector<2x32xf32>
    %13 = tpu.matmul %12, %11, %cst_8 {dimension_numbers = #tpu.dot_dimension_numbers<[1], [0], [0], [1], [0, 0, 1, 1], [], []>} : vector<2x392xf32>, vector<392x32xf32>, vector<2x32xf32> -> vector<2x32xf32>
    %14 = arith.mulf %13, %13 : vector<2x32xf32>
    %cst_9 = arith.constant dense<0.000000e+00> : vector<2xf32>
    %15 = vector.multi_reduction <add>, %14, %cst_9 [1] : vector<2x32xf32> to vector<2xf32>
    %16 = vector.shape_cast %15 : vector<2xf32> to vector<2x1xf32>
    %c0_10 = arith.constant 0 : index
    %c0_11 = arith.constant 0 : index
    %17 = vector.load %arg4[%c0_10, %c0_11] : memref<32x16xf32, #tpu.memory_space<vmem>>, vector<32x16xf32>
    %cst_12 = arith.constant dense<0.000000e+00> : vector<2x16xf32>
    %18 = tpu.matmul %13, %17, %cst_12 {dimension_numbers = #tpu.dot_dimension_numbers<[1], [0], [0], [1], [0, 0, 1, 1], [], []>} : vector<2x32xf32>, vector<32x16xf32>, vector<2x16xf32> -> vector<2x16xf32>
    %19 = vector.broadcast %2 : vector<1x16xf32> to vector<2x16xf32>
    %20 = arith.addf %18, %19 : vector<2x16xf32>
    %cst_13 = arith.constant 3.125000e-02 : f32
    %21 = vector.broadcast %cst_13 : f32 to vector<2x1xf32>
    %22 = arith.mulf %21, %16 : vector<2x1xf32>
    %23 = vector.broadcast %22 : vector<2x1xf32> to vector<2x16xf32>
    %24 = arith.subf %20, %23 : vector<2x16xf32>
    %25 = math.exp %24 : vector<2x16xf32>
    %c0_14 = arith.constant 0 : index
    %c0_15 = arith.constant 0 : index
    %26 = vector.load %arg5[%c0_14, %c0_15] : memref<16x10xf32, #tpu.memory_space<vmem>>, vector<16x10xf32>
    %cst_16 = arith.constant dense<0.000000e+00> : vector<2x10xf32>
    %27 = tpu.matmul %25, %26, %cst_16 {dimension_numbers = #tpu.dot_dimension_numbers<[1], [0], [0], [1], [0, 0, 1, 1], [], []>} : vector<2x16xf32>, vector<16x10xf32>, vector<2x10xf32> -> vector<2x10xf32>
    %28 = vector.broadcast %3 : vector<1x10xf32> to vector<2x10xf32>
    %29 = arith.addf %27, %28 : vector<2x10xf32>
    %30 = vector.extract_strided_slice %29 {offsets = [0, 0], sizes = [2, 6], strides = [1, 1]} : vector<2x10xf32> to vector<2x6xf32>
    %31 = vector.extract_strided_slice %29 {offsets = [0, 6], sizes = [2, 4], strides = [1, 1]} : vector<2x10xf32> to vector<2x4xf32>
    %cst_17 = arith.constant 0.000000e+00 : f32
    %32 = vector.broadcast %cst_17 : f32 to vector<2x4xf32>
    %33 = arith.subf %32, %31 : vector<2x4xf32>
    %cst_18 = arith.constant 0.000000e+00 : f32
    %34 = vector.broadcast %cst_18 : f32 to vector<2x6xf32>
    %35 = arith.cmpf oge, %30, %34 : vector<2x6xf32>
    %36 = arith.extui %35 : vector<2x6xi1> to vector<2x6xi32>
    %37 = arith.sitofp %36 : vector<2x6xi32> to vector<2x6xf32>
    %c0_19 = arith.constant 0 : index
    %c0_20 = arith.constant 0 : index
    %38 = vector.load %arg6[%c0_19, %c0_20] : memref<6x4xf32, #tpu.memory_space<vmem>>, vector<6x4xf32>
    %cst_21 = arith.constant dense<0.000000e+00> : vector<2x4xf32>
    %39 = tpu.matmul %37, %38, %cst_21 {dimension_numbers = #tpu.dot_dimension_numbers<[1], [0], [0], [1], [0, 0, 1, 1], [], []>} : vector<2x6xf32>, vector<6x4xf32>, vector<2x4xf32> -> vector<2x4xf32>
    %40 = vector.broadcast %4 : vector<1x4xf32> to vector<2x4xf32>
    %41 = arith.addf %39, %40 : vector<2x4xf32>
    %42 = math.absf %33 : vector<2x4xf32>
    %cst_22 = arith.constant 1.000000e+00 : f32
    %43 = vector.broadcast %cst_22 : f32 to vector<2x4xf32>
    %44 = arith.addf %42, %43 : vector<2x4xf32>
    %cst_23 = arith.constant 3.000000e+00 : f32
    %45 = vector.broadcast %cst_23 : f32 to vector<2x4xf32>
    %46 = arith.mulf %45, %44 : vector<2x4xf32>
    %47 = arith.divf %33, %46 : vector<2x4xf32>
    %48 = arith.addf %41, %47 : vector<2x4xf32>
    %c0_24 = arith.constant 0 : index
    %c0_25 = arith.constant 0 : index
    %49 = vector.load %arg8[%c0_24, %c0_25] : memref<2x4xf32, #tpu.memory_space<vmem>>, vector<2x4xf32>
    tpu.vector_store %arg8[%c0_24, %c0_25], %48 {strides = array<i32>} : memref<2x4xf32, #tpu.memory_space<vmem>>, vector<2x4xf32>,
    return
  }
  func.func @transform_0(%arg0: i32) -> (i32, i32) {
    %c0_i32 = arith.constant 0 : i32
    %c0_i32_0 = arith.constant 0 : i32
    %c0_i32_1 = arith.constant 0 : i32
    return %c0_i32, %c0_i32_0 : i32, i32
  }
  func.func @transform_1(%arg0: i32) -> (i32, i32) {
    %c0_i32 = arith.constant 0 : i32
    %c0_i32_0 = arith.constant 0 : i32
    %c0_i32_1 = arith.constant 0 : i32
    return %c0_i32, %c0_i32_0 : i32, i32
  }
  func.func @transform_2(%arg0: i32) -> (i32, i32) {
    %c0_i32 = arith.constant 0 : i32
    %c0_i32_0 = arith.constant 0 : i32
    %c0_i32_1 = arith.constant 0 : i32
    return %c0_i32, %c0_i32_0 : i32, i32
  }
  func.func @transform_3(%arg0: i32) -> (i32, i32) {
    %c0_i32 = arith.constant 0 : i32
    %c0_i32_0 = arith.constant 0 : i32
    %c0_i32_1 = arith.constant 0 : i32
    return %c0_i32, %c0_i32_0 : i32, i32
  }
  func.func @transform_4(%arg0: i32) -> (i32, i32) {
    %c0_i32 = arith.constant 0 : i32
    %c0_i32_0 = arith.constant 0 : i32
    %c0_i32_1 = arith.constant 0 : i32
    return %c0_i32, %c0_i32_0 : i32, i32
  }
  func.func @transform_5(%arg0: i32) -> (i32, i32) {
    %c0_i32 = arith.constant 0 : i32
    %c0_i32_0 = arith.constant 0 : i32
    %c0_i32_1 = arith.constant 0 : i32
    return %c0_i32, %c0_i32_0 : i32, i32
  }
  func.func @transform_6(%arg0: i32) -> (i32, i32) {
    %c0_i32 = arith.constant 0 : i32
    %c0_i32_0 = arith.constant 0 : i32
    %c0_i32_1 = arith.constant 0 : i32
    return %c0_i32, %c0_i32_0 : i32, i32
  }
  func.func @transform_7(%arg0: i32) -> (i32, i32) {
    %c0_i32 = arith.constant 0 : i32
    %c0_i32_0 = arith.constant 0 : i32
    %c0_i32_1 = arith.constant 0 : i32
    return %c0_i32, %c0_i32_0 : i32, i32
  }
}

</mosaic_0001>

<llo_original>
// kernel: tpu_custom_call.1
$region0: #{tpu_custom_call.1}
  #allocation0 [shape = 'u32[]', space=smem, size = 0x4, offset = 0x4, fixed_abs, tag = 'smem constant byte address 0x4 - core index']
  #allocation1 [shape = 'u32[144,128]{1,0:T(1,128)}', space=vmem, size = 0x12000, scoped, tag = 'internal scratch']
  %s0 = inlined_call_operand.vmem [shape: f32[392,36], index: 0, kind: input, shape index: {}]
  %s1 = inlined_call_operand.vmem [shape: f32[36,32], index: 1, kind: input, shape index: {}]
  %s2 = inlined_call_operand.vmem [shape: f32[2,392], index: 2, kind: input, shape index: {}]
  %s3 = inlined_call_operand.vmem [shape: f32[32,16], index: 3, kind: input, shape index: {}]
  %s4 = inlined_call_operand.vmem [shape: f32[16,10], index: 4, kind: input, shape index: {}]
  %s5 = inlined_call_operand.vmem [shape: f32[6,4], index: 5, kind: input, shape index: {}]
  %s6 = inlined_call_operand.vmem [shape: f32[1,62], index: 6, kind: input, shape index: {}]
  %s7 = inlined_call_operand.hbm [shape: f32[2,4], index: 7, kind: output, shape index: {}]
  %s8 = sld [smem:[#allocation0]]
  $region38: #{tpu_custom_call.1} parent=0
    _
  %s10 = ssub.s32 1, %s8
  %s11 = scalar_select 0, %s10, %s8
  $region1: #{tpu_custom_call.1} parent=0
    #allocation2 [shape = 'u8[1024]{0}', space=vmem, size = 0x400, scoped, tag = 'output window, operand 0, single buffered']
    #allocation3 [shape = 's32[1]{0}', space=sflag, size = 0x4, scoped, tag = 'scoped memory for tpu_custom_call.1']
    %12 = vsyncpa [#allocation3], 0
    // Predicated region
    $region2: #{tpu_custom_call.1} parent=1 // pred_check
      _
    $region3: #{tpu_custom_call.1} parent=1 // pred_check_branch
      %14 = sbr.rel (0) target = $region5
    $region4: #{tpu_custom_call.1} parent=1 // pred_region
      _
    $region5: #{tpu_custom_call.1} parent=1 // pred_fallthru
      _
    // Predicated region
    $region6: #{tpu_custom_call.1} parent=1 // pred_check
      _
    $region7: #{tpu_custom_call.1} parent=1 // pred_check_branch
      %16 = sbr.rel (0) target = $region9
    $region8: #{tpu_custom_call.1} parent=1 // pred_region
      _
    $region9: #{tpu_custom_call.1} parent=1 // pred_fallthru
      _
    // Predicated region
    $region10: #{tpu_custom_call.1} parent=1 // pred_check
      _
    $region11: #{tpu_custom_call.1} parent=1 // pred_check_branch
      %18 = sbr.rel (0) target = $region13
    $region12: #{tpu_custom_call.1} parent=1 // pred_region
      _
    $region13: #{tpu_custom_call.1} parent=1 // pred_fallthru
      _
    // Predicated region
    $region14: #{tpu_custom_call.1} parent=1 // pred_check
      _
    $region15: #{tpu_custom_call.1} parent=1 // pred_check_branch
      %20 = sbr.rel (0) target = $region17
    $region16: #{tpu_custom_call.1} parent=1 // pred_region
      _
    $region17: #{tpu_custom_call.1} parent=1 // pred_fallthru
      _
    // Predicated region
    $region18: #{tpu_custom_call.1} parent=1 // pred_check
      _
    $region19: #{tpu_custom_call.1} parent=1 // pred_check_branch
      %22 = sbr.rel (0) target = $region21
    $region20: #{tpu_custom_call.1} parent=1 // pred_region
      _
    $region21: #{tpu_custom_call.1} parent=1 // pred_fallthru
      _
    // Predicated region
    $region22: #{tpu_custom_call.1} parent=1 // pred_check
      _
    $region23: #{tpu_custom_call.1} parent=1 // pred_check_branch
      %24 = sbr.rel (0) target = $region25
    $region24: #{tpu_custom_call.1} parent=1 // pred_region
      _
    $region25: #{tpu_custom_call.1} parent=1 // pred_fallthru
      _
    // Predicated region
    $region26: #{tpu_custom_call.1} parent=1 // pred_check
      _
    $region27: #{tpu_custom_call.1} parent=1 // pred_check_branch
      %26 = sbr.rel (0) target = $region29
    $region28: #{tpu_custom_call.1} parent=1 // pred_region
      _
    $region29: #{tpu_custom_call.1} parent=1 // pred_fallthru
      _
    %v27 = vld [vmem:[%s6] sm:$0x1]
    %v28 = vld [vmem:[%s0] sm:$0xff]
    %v29 = vld [vmem:[%s0 + $0x8] sm:$0xff]
    %v30 = vld [vmem:[%s0 + $0x10] sm:$0xff]
    %v31 = vld [vmem:[%s0 + $0x18] sm:$0xff]
    %v32 = vld [vmem:[%s0 + $0x20] sm:$0xff]
    %v33 = vld [vmem:[%s0 + $0x28] sm:$0xff]
    %v34 = vld [vmem:[%s0 + $0x30] sm:$0xff]
    %v35 = vld [vmem:[%s0 + $0x38] sm:$0xff]
    %v36 = vld [vmem:[%s0 + $0x40] sm:$0xff]
    %v37 = vld [vmem:[%s0 + $0x48] sm:$0xff]
    %v38 = vld [vmem:[%s0 + $0x50] sm:$0xff]
    %v39 = vld [vmem:[%s0 + $0x58] sm:$0xff]
    %v40 = vld [vmem:[%s0 + $0x60] sm:$0xff]
    %v41 = vld [vmem:[%s0 + $0x68] sm:$0xff]
    %v42 = vld [vmem:[%s0 + $0x70] sm:$0xff]
    %v43 = vld [vmem:[%s0 + $0x78] sm:$0xff]
    %v44 = vld [vmem:[%s0 + $0x80] sm:$0xff]
    %v45 = vld [vmem:[%s0 + $0x88] sm:$0xff]
    %v46 = vld [vmem:[%s0 + $0x90] sm:$0xff]
    %v47 = vld [vmem:[%s0 + $0x98] sm:$0xff]
    %v48 = vld [vmem:[%s0 + $0xa0] sm:$0xff]
    %v49 = vld [vmem:[%s0 + $0xa8] sm:$0xff]
    %v50 = vld [vmem:[%s0 + $0xb0] sm:$0xff]
    %v51 = vld [vmem:[%s0 + $0xb8] sm:$0xff]
    %v52 = vld [vmem:[%s0 + $0xc0] sm:$0xff]
    %v53 = vld [vmem:[%s0 + $0xc8] sm:$0xff]
    %v54 = vld [vmem:[%s0 + $0xd0] sm:$0xff]
    %v55 = vld [vmem:[%s0 + $0xd8] sm:$0xff]
    %v56 = vld [vmem:[%s0 + $0xe0] sm:$0xff]
    %v57 = vld [vmem:[%s0 + $0xe8] sm:$0xff]
    %v58 = vld [vmem:[%s0 + $0xf0] sm:$0xff]
    %v59 = vld [vmem:[%s0 + $0xf8] sm:$0xff]
    %v60 = vld [vmem:[%s0 + $0x100] sm:$0xff]
    %v61 = vld [vmem:[%s0 + $0x108] sm:$0xff]
    %v62 = vld [vmem:[%s0 + $0x110] sm:$0xff]
    %v63 = vld [vmem:[%s0 + $0x118] sm:$0xff]
    %v64 = vld [vmem:[%s0 + $0x120] sm:$0xff]
    %v65 = vld [vmem:[%s0 + $0x128] sm:$0xff]
    %v66 = vld [vmem:[%s0 + $0x130] sm:$0xff]
    %v67 = vld [vmem:[%s0 + $0x138] sm:$0xff]
    %v68 = vld [vmem:[%s0 + $0x140] sm:$0xff]
    %v69 = vld [vmem:[%s0 + $0x148] sm:$0xff]
    %v70 = vld [vmem:[%s0 + $0x150] sm:$0xff]
    %v71 = vld [vmem:[%s0 + $0x158] sm:$0xff]
    %v72 = vld [vmem:[%s0 + $0x160] sm:$0xff]
    %v73 = vld [vmem:[%s0 + $0x168] sm:$0xff]
    %v74 = vld [vmem:[%s0 + $0x170] sm:$0xff]
    %v75 = vld [vmem:[%s0 + $0x178] sm:$0xff]
    %v76 = vld [vmem:[%s0 + $0x180] sm:$0xff]
    %v77 = vld [vmem:[%s1] sm:$0xff]
    %v78 = vld [vmem:[%s1 + $0x8] sm:$0xff]
    %v79 = vld [vmem:[%s1 + $0x10] sm:$0xff]
    %v80 = vld [vmem:[%s1 + $0x18] sm:$0xff]
    %v81 = vld [vmem:[%s1 + $0x20] sm:$0xf]
    %v83 = vlaneseq
    %v84 = vshrl.u32 %v83, 7
    %v85 = vsub.s32 0, %v84
    %v86 = vrot.slane %v27, %v85
    %vm88 = vcmask 293888
    %v90 = vsel %vm88, %v28, 0
    %v93 = vsel %vm88, %v29, 0
    %v96 = vsel %vm88, %v30, 0
    %v99 = vsel %vm88, %v31, 0
    %v102 = vsel %vm88, %v32, 0
    %v105 = vsel %vm88, %v33, 0
    %v108 = vsel %vm88, %v34, 0
    %v111 = vsel %vm88, %v35, 0
    %v114 = vsel %vm88, %v36, 0
    %v117 = vsel %vm88, %v37, 0
    %v120 = vsel %vm88, %v38, 0
    %v123 = vsel %vm88, %v39, 0
    %v126 = vsel %vm88, %v40, 0
    %v129 = vsel %vm88, %v41, 0
    %v132 = vsel %vm88, %v42, 0
    %v135 = vsel %vm88, %v43, 0
    %v138 = vsel %vm88, %v44, 0
    %v141 = vsel %vm88, %v45, 0
    %v144 = vsel %vm88, %v46, 0
    %v147 = vsel %vm88, %v47, 0
    %v150 = vsel %vm88, %v48, 0
    %v153 = vsel %vm88, %v49, 0
    %v156 = vsel %vm88, %v50, 0
    %v159 = vsel %vm88, %v51, 0
    %v162 = vsel %vm88, %v52, 0
    %v165 = vsel %vm88, %v53, 0
    %v168 = vsel %vm88, %v54, 0
    %v171 = vsel %vm88, %v55, 0
    %v174 = vsel %vm88, %v56, 0
    %v177 = vsel %vm88, %v57, 0
    %v180 = vsel %vm88, %v58, 0
    %v183 = vsel %vm88, %v59, 0
    %v186 = vsel %vm88, %v60, 0
    %v189 = vsel %vm88, %v61, 0
    %v192 = vsel %vm88, %v62, 0
    %v195 = vsel %vm88, %v63, 0
    %v198 = vsel %vm88, %v64, 0
    %v201 = vsel %vm88, %v65, 0
    %v204 = vsel %vm88, %v66, 0
    %v207 = vsel %vm88, %v67, 0
    %v210 = vsel %vm88, %v68, 0
    %v213 = vsel %vm88, %v69, 0
    %v216 = vsel %vm88, %v70, 0
    %v219 = vsel %vm88, %v71, 0
    %v222 = vsel %vm88, %v72, 0
    %v225 = vsel %vm88, %v73, 0
    %v228 = vsel %vm88, %v74, 0
    %v231 = vsel %vm88, %v75, 0
    %v234 = vsel %vm88, %v76, 0
    %vm236 = vcmask 1043456
    %v238 = vsel %vm236, %v81, 0
    %240 = vmatprep.subr.mxu0 0.0
    %241 = vmatpush1.msra.mxu0 %v77
    %242 = vmatprep.subr.mxu0 0.0
    %243 = vmatpush1.msra.mxu0 %v78
    %244 = vmatprep.subr.mxu0 0.0
    %245 = vmatpush1.msra.mxu0 %v79
    %246 = vmatprep.subr.mxu0 0.0
    %247 = vmatpush1.msra.mxu0 %v80
    %248 = vmatprep.subr.mxu0 0.0
    %249 = vmatpush1.msra.mxu0 %v238
    %250 = vmatprep.subr.mxu0 0.0
    %251 = vmatpush1.msra.mxu0 0.0
    %252 = vmatprep.subr.mxu0 0.0
    %253 = vmatpush1.msra.mxu0 0.0
    %254 = vmatprep.subr.mxu0 0.0
    %255 = vmatpush1.msra.mxu0 0.0
    %256 = vmatprep.subr.mxu0 0.0
    %257 = vmatpush1.msra.mxu0 0.0
    %258 = vmatprep.subr.mxu0 0.0
    %259 = vmatpush1.msra.mxu0 0.0
    %260 = vmatprep.subr.mxu0 0.0
    %261 = vmatpush1.msra.mxu0 0.0
    %262 = vmatprep.subr.mxu0 0.0
    %263 = vmatpush1.msra.mxu0 0.0
    %264 = vmatprep.subr.mxu0 0.0
    %265 = vmatpush1.msra.mxu0 0.0
    %266 = vmatprep.subr.mxu0 0.0
    %267 = vmatpush1.msra.mxu0 0.0
    %268 = vmatprep.subr.mxu0 0.0
    %269 = vmatpush1.msra.mxu0 0.0
    %270 = vmatprep.subr.mxu0 0.0
    %271 = vmatpush1.msra.mxu0 0.0
    %272 = vmatprep.subr.mxu0 0.0
    %273 = vmatpush1.msra.mxu0 0.0
    %274 = vmatprep.subr.mxu0 0.0
    %275 = vmatpush1.msra.mxu0 0.0
    %276 = vmatprep.subr.mxu0 0.0
    %277 = vmatpush1.msra.mxu0 0.0
    %278 = vmatprep.subr.mxu0 0.0
    %279 = vmatpush1.msra.mxu0 0.0
    %280 = vmatprep.subr.mxu0 0.0
    %281 = vmatpush1.msra.mxu0 0.0
    %282 = vmatprep.subr.mxu0 0.0
    %283 = vmatpush1.msra.mxu0 0.0
    %284 = vmatprep.subr.mxu0 0.0
    %285 = vmatpush1.msra.mxu0 0.0
    %286 = vmatprep.subr.mxu0 0.0
    %287 = vmatpush1.msra.mxu0 0.0
    %288 = vmatprep.subr.mxu0 0.0
    %289 = vmatpush1.msra.mxu0 0.0
    %290 = vmatprep.subr.mxu0 0.0
    %291 = vmatpush1.msra.mxu0 0.0
    %292 = vmatprep.subr.mxu0 0.0
    %293 = vmatpush1.msra.mxu0 0.0
    %294 = vmatprep.subr.mxu0 0.0
    %295 = vmatpush1.msra.mxu0 0.0
    %296 = vmatprep.subr.mxu0 0.0
    %297 = vmatpush1.msra.mxu0 0.0
    %298 = vmatprep.subr.mxu0 0.0
    %299 = vmatpush1.msra.mxu0 0.0
    %300 = vmatprep.subr.mxu0 0.0
    %301 = vmatpush1.msra.mxu0 0.0
    %302 = vmatprep.subr.mxu0 0.0
    %303 = vmatpush1.msra.mxu0 0.0
    %304 = vmatprep.mubr.f32.mxu0 0.0
    %305 = vmatmul.mubr.f32.gmra.mrb[0].mxu0 %v90
    %v306 = vpop.f32.mrb[0].mxu0
    %v307 = vadd.f32 %v86, %v306
    %v308 = vpop.f32.mrb[0].mxu0
    %309 = vmatprep.mubr.f32.mxu0 0.0
    %310 = vmatmul.mubr.f32.gmra.mrb[0].mxu0 %v93
    %v311 = vpop.f32.mrb[0].mxu0
    %v312 = vadd.f32 %v86, %v311
    %v313 = vpop.f32.mrb[0].mxu0
    %314 = vmatprep.mubr.f32.mxu0 0.0
    %315 = vmatmul.mubr.f32.gmra.mrb[0].mxu0 %v96
    %v316 = vpop.f32.mrb[0].mxu0
    %v317 = vadd.f32 %v86, %v316
    %v318 = vpop.f32.mrb[0].mxu0
    %319 = vmatprep.mubr.f32.mxu0 0.0
    %320 = vmatmul.mubr.f32.gmra.mrb[0].mxu0 %v99
    %v321 = vpop.f32.mrb[0].mxu0
    %v322 = vadd.f32 %v86, %v321
    %v323 = vpop.f32.mrb[0].mxu0
    %324 = vmatprep.mubr.f32.mxu0 0.0
    %325 = vmatmul.mubr.f32.gmra.mrb[0].mxu0 %v102
    %v326 = vpop.f32.mrb[0].mxu0
    %v327 = vadd.f32 %v86, %v326
    %v328 = vpop.f32.mrb[0].mxu0
    %329 = vmatprep.mubr.f32.mxu0 0.0
    %330 = vmatmul.mubr.f32.gmra.mrb[0].mxu0 %v105
    %v331 = vpop.f32.mrb[0].mxu0
    %v332 = vadd.f32 %v86, %v331
    %v333 = vpop.f32.mrb[0].mxu0
    %334 = vmatprep.mubr.f32.mxu0 0.0
    %335 = vmatmul.mubr.f32.gmra.mrb[0].mxu0 %v108
    %v336 = vpop.f32.mrb[0].mxu0
    %v337 = vadd.f32 %v86, %v336
    %v338 = vpop.f32.mrb[0].mxu0
    %339 = vmatprep.mubr.f32.mxu0 0.0
    %340 = vmatmul.mubr.f32.gmra.mrb[0].mxu0 %v111
    %v341 = vpop.f32.mrb[0].mxu0
    %v342 = vadd.f32 %v86, %v341
    %v343 = vpop.f32.mrb[0].mxu0
    %344 = vmatprep.mubr.f32.mxu0 0.0
    %345 = vmatmul.mubr.f32.gmra.mrb[0].mxu0 %v114
    %v346 = vpop.f32.mrb[0].mxu0
    %v347 = vadd.f32 %v86, %v346
    %v348 = vpop.f32.mrb[0].mxu0
    %349 = vmatprep.mubr.f32.mxu0 0.0
    %350 = vmatmul.mubr.f32.gmra.mrb[0].mxu0 %v117
    %v351 = vpop.f32.mrb[0].mxu0
    %v352 = vadd.f32 %v86, %v351
    %v353 = vpop.f32.mrb[0].mxu0
    %354 = vmatprep.mubr.f32.mxu0 0.0
    %355 = vmatmul.mubr.f32.gmra.mrb[0].mxu0 %v120
    %v356 = vpop.f32.mrb[0].mxu0
    %v357 = vadd.f32 %v86, %v356
    %v358 = vpop.f32.mrb[0].mxu0
    %359 = vmatprep.mubr.f32.mxu0 0.0
    %360 = vmatmul.mubr.f32.gmra.mrb[0].mxu0 %v123
    %v361 = vpop.f32.mrb[0].mxu0
    %v362 = vadd.f32 %v86, %v361
    %v363 = vpop.f32.mrb[0].mxu0
    %364 = vmatprep.mubr.f32.mxu0 0.0
    %365 = vmatmul.mubr.f32.gmra.mrb[0].mxu0 %v126
    %v366 = vpop.f32.mrb[0].mxu0
    %v367 = vadd.f32 %v86, %v366
    %v368 = vpop.f32.mrb[0].mxu0
    %369 = vmatprep.mubr.f32.mxu0 0.0
    %370 = vmatmul.mubr.f32.gmra.mrb[0].mxu0 %v129
    %v371 = vpop.f32.mrb[0].mxu0
    %v372 = vadd.f32 %v86, %v371
    %v373 = vpop.f32.mrb[0].mxu0
    %374 = vmatprep.mubr.f32.mxu0 0.0
    %375 = vmatmul.mubr.f32.gmra.mrb[0].mxu0 %v132
    %v376 = vpop.f32.mrb[0].mxu0
    %v377 = vadd.f32 %v86, %v376
    %v378 = vpop.f32.mrb[0].mxu0
    %379 = vmatprep.mubr.f32.mxu0 0.0
    %380 = vmatmul.mubr.f32.gmra.mrb[0].mxu0 %v135
    %v381 = vpop.f32.mrb[0].mxu0
    %v382 = vadd.f32 %v86, %v381
    %v383 = vpop.f32.mrb[0].mxu0
    %384 = vmatprep.mubr.f32.mxu0 0.0
    %385 = vmatmul.mubr.f32.gmra.mrb[0].mxu0 %v138
    %v386 = vpop.f32.mrb[0].mxu0
    %v387 = vadd.f32 %v86, %v386
    %v388 = vpop.f32.mrb[0].mxu0
    %389 = vmatprep.mubr.f32.mxu0 0.0
    %390 = vmatmul.mubr.f32.gmra.mrb[0].mxu0 %v141
    %v391 = vpop.f32.mrb[0].mxu0
    %v392 = vadd.f32 %v86, %v391
    %v393 = vpop.f32.mrb[0].mxu0
    %394 = vmatprep.mubr.f32.mxu0 0.0
    %395 = vmatmul.mubr.f32.gmra.mrb[0].mxu0 %v144
    %v396 = vpop.f32.mrb[0].mxu0
    %v397 = vadd.f32 %v86, %v396
    %v398 = vpop.f32.mrb[0].mxu0
    %399 = vmatprep.mubr.f32.mxu0 0.0
    %400 = vmatmul.mubr.f32.gmra.mrb[0].mxu0 %v147
    %v401 = vpop.f32.mrb[0].mxu0
    %v402 = vadd.f32 %v86, %v401
    %v403 = vpop.f32.mrb[0].mxu0
    %404 = vmatprep.mubr.f32.mxu0 0.0
    %405 = vmatmul.mubr.f32.gmra.mrb[0].mxu0 %v150
    %v406 = vpop.f32.mrb[0].mxu0
    %v407 = vadd.f32 %v86, %v406
    %v408 = vpop.f32.mrb[0].mxu0
    %409 = vmatprep.mubr.f32.mxu0 0.0
    %410 = vmatmul.mubr.f32.gmra.mrb[0].mxu0 %v153
    %v411 = vpop.f32.mrb[0].mxu0
    %v412 = vadd.f32 %v86, %v411
    %v413 = vpop.f32.mrb[0].mxu0
    %414 = vmatprep.mubr.f32.mxu0 0.0
    %415 = vmatmul.mubr.f32.gmra.mrb[0].mxu0 %v156
    %v416 = vpop.f32.mrb[0].mxu0
    %v417 = vadd.f32 %v86, %v416
    %v418 = vpop.f32.mrb[0].mxu0
    %419 = vmatprep.mubr.f32.mxu0 0.0
    %420 = vmatmul.mubr.f32.gmra.mrb[0].mxu0 %v159
    %v421 = vpop.f32.mrb[0].mxu0
    %v422 = vadd.f32 %v86, %v421
    %v423 = vpop.f32.mrb[0].mxu0
    %424 = vmatprep.mubr.f32.mxu0 0.0
    %425 = vmatmul.mubr.f32.gmra.mrb[0].mxu0 %v162
    %v426 = vpop.f32.mrb[0].mxu0
    %v427 = vadd.f32 %v86, %v426
    %v428 = vpop.f32.mrb[0].mxu0
    %429 = vmatprep.mubr.f32.mxu0 0.0
    %430 = vmatmul.mubr.f32.gmra.mrb[0].mxu0 %v165
    %v431 = vpop.f32.mrb[0].mxu0
    %v432 = vadd.f32 %v86, %v431
    %v433 = vpop.f32.mrb[0].mxu0
    %434 = vmatprep.mubr.f32.mxu0 0.0
    %435 = vmatmul.mubr.f32.gmra.mrb[0].mxu0 %v168
    %v436 = vpop.f32.mrb[0].mxu0
    %v437 = vadd.f32 %v86, %v436
    %v438 = vpop.f32.mrb[0].mxu0
    %439 = vmatprep.mubr.f32.mxu0 0.0
    %440 = vmatmul.mubr.f32.gmra.mrb[0].mxu0 %v171
    %v441 = vpop.f32.mrb[0].mxu0
    %v442 = vadd.f32 %v86, %v441
    %v443 = vpop.f32.mrb[0].mxu0
    %444 = vmatprep.mubr.f32.mxu0 0.0
    %445 = vmatmul.mubr.f32.gmra.mrb[0].mxu0 %v174
    %v446 = vpop.f32.mrb[0].mxu0
    %v447 = vadd.f32 %v86, %v446
    %v448 = vpop.f32.mrb[0].mxu0
    %449 = vmatprep.mubr.f32.mxu0 0.0
    %450 = vmatmul.mubr.f32.gmra.mrb[0].mxu0 %v177
    %v451 = vpop.f32.mrb[0].mxu0
    %v452 = vadd.f32 %v86, %v451
    %v453 = vpop.f32.mrb[0].mxu0
    %454 = vmatprep.mubr.f32.mxu0 0.0
    %455 = vmatmul.mubr.f32.gmra.mrb[0].mxu0 %v180
    %v456 = vpop.f32.mrb[0].mxu0
    %v457 = vadd.f32 %v86, %v456
    %v458 = vpop.f32.mrb[0].mxu0
    %459 = vmatprep.mubr.f32.mxu0 0.0
    %460 = vmatmul.mubr.f32.gmra.mrb[0].mxu0 %v183
    %v461 = vpop.f32.mrb[0].mxu0
    %v462 = vadd.f32 %v86, %v461
    %v463 = vpop.f32.mrb[0].mxu0
    %464 = vmatprep.mubr.f32.mxu0 0.0
    %465 = vmatmul.mubr.f32.gmra.mrb[0].mxu0 %v186
    %v466 = vpop.f32.mrb[0].mxu0
    %v467 = vadd.f32 %v86, %v466
    %v468 = vpop.f32.mrb[0].mxu0
    %469 = vmatprep.mubr.f32.mxu0 0.0
    %470 = vmatmul.mubr.f32.gmra.mrb[0].mxu0 %v189
    %v471 = vpop.f32.mrb[0].mxu0
    %v472 = vadd.f32 %v86, %v471
    %v473 = vpop.f32.mrb[0].mxu0
    %474 = vmatprep.mubr.f32.mxu0 0.0
    %475 = vmatmul.mubr.f32.gmra.mrb[0].mxu0 %v192
    %v476 = vpop.f32.mrb[0].mxu0
    %v477 = vadd.f32 %v86, %v476
    %v478 = vpop.f32.mrb[0].mxu0
    %479 = vmatprep.mubr.f32.mxu0 0.0
    %480 = vmatmul.mubr.f32.gmra.mrb[0].mxu0 %v195
    %v481 = vpop.f32.mrb[0].mxu0
    %v482 = vadd.f32 %v86, %v481
    %v483 = vpop.f32.mrb[0].mxu0
    %484 = vmatprep.mubr.f32.mxu0 0.0
    %485 = vmatmul.mubr.f32.gmra.mrb[0].mxu0 %v198
    %v486 = vpop.f32.mrb[0].mxu0
    %v487 = vadd.f32 %v86, %v486
    %v488 = vpop.f32.mrb[0].mxu0
    %489 = vmatprep.mubr.f32.mxu0 0.0
    %490 = vmatmul.mubr.f32.gmra.mrb[0].mxu0 %v201
    %v491 = vpop.f32.mrb[0].mxu0
    %v492 = vadd.f32 %v86, %v491
    %v493 = vpop.f32.mrb[0].mxu0
    %494 = vmatprep.mubr.f32.mxu0 0.0
    %495 = vmatmul.mubr.f32.gmra.mrb[0].mxu0 %v204
    %v496 = vpop.f32.mrb[0].mxu0
    %v497 = vadd.f32 %v86, %v496
    %v498 = vpop.f32.mrb[0].mxu0
    %499 = vmatprep.mubr.f32.mxu0 0.0
    %500 = vmatmul.mubr.f32.gmra.mrb[0].mxu0 %v207
    %v501 = vpop.f32.mrb[0].mxu0
    %v502 = vadd.f32 %v86, %v501
    %v503 = vpop.f32.mrb[0].mxu0
    %504 = vmatprep.mubr.f32.mxu0 0.0
    %505 = vmatmul.mubr.f32.gmra.mrb[0].mxu0 %v210
    %v506 = vpop.f32.mrb[0].mxu0
    %v507 = vadd.f32 %v86, %v506
    %v508 = vpop.f32.mrb[0].mxu0
    %509 = vmatprep.mubr.f32.mxu0 0.0
    %510 = vmatmul.mubr.f32.gmra.mrb[0].mxu0 %v213
    %v511 = vpop.f32.mrb[0].mxu0
    %v512 = vadd.f32 %v86, %v511
    %v513 = vpop.f32.mrb[0].mxu0
    %514 = vmatprep.mubr.f32.mxu0 0.0
    %515 = vmatmul.mubr.f32.gmra.mrb[0].mxu0 %v216
    %v516 = vpop.f32.mrb[0].mxu0
    %v517 = vadd.f32 %v86, %v516
    %v518 = vpop.f32.mrb[0].mxu0
    %519 = vmatprep.mubr.f32.mxu0 0.0
    %520 = vmatmul.mubr.f32.gmra.mrb[0].mxu0 %v219
    %v521 = vpop.f32.mrb[0].mxu0
    %v522 = vadd.f32 %v86, %v521
    %v523 = vpop.f32.mrb[0].mxu0
    %524 = vmatprep.mubr.f32.mxu0 0.0
    %525 = vmatmul.mubr.f32.gmra.mrb[0].mxu0 %v222
    %v526 = vpop.f32.mrb[0].mxu0
    %v527 = vadd.f32 %v86, %v526
    %v528 = vpop.f32.mrb[0].mxu0
    %529 = vmatprep.mubr.f32.mxu0 0.0
    %530 = vmatmul.mubr.f32.gmra.mrb[0].mxu0 %v225
    %v531 = vpop.f32.mrb[0].mxu0
    %v532 = vadd.f32 %v86, %v531
    %v533 = vpop.f32.mrb[0].mxu0
    %534 = vmatprep.mubr.f32.mxu0 0.0
    %535 = vmatmul.mubr.f32.gmra.mrb[0].mxu0 %v228
    %v536 = vpop.f32.mrb[0].mxu0
    %v537 = vadd.f32 %v86, %v536
    %v538 = vpop.f32.mrb[0].mxu0
    %539 = vmatprep.mubr.f32.mxu0 0.0
    %540 = vmatmul.mubr.f32.gmra.mrb[0].mxu0 %v231
    %v541 = vpop.f32.mrb[0].mxu0
    %v542 = vadd.f32 %v86, %v541
    %v543 = vpop.f32.mrb[0].mxu0
    %544 = vmatprep.mubr.f32.mxu0 0.0
    %545 = vmatmul.mubr.f32.gmra.mrb[0].mxu0 %v234
    %v546 = vpop.f32.mrb[0].mxu0
    %v547 = vadd.f32 %v86, %v546
    %v548 = vpop.f32.mrb[0].mxu0
    %549 = vdwg.mxu0
    %v550 = vmax.f32 %v307, 0.0
    %v551 = vmax.f32 %v312, 0.0
    %v552 = vmax.f32 %v317, 0.0
    %v553 = vmax.f32 %v322, 0.0
    %v554 = vmax.f32 %v327, 0.0
    %v555 = vmax.f32 %v332, 0.0
    %v556 = vmax.f32 %v337, 0.0
    %v557 = vmax.f32 %v342, 0.0
    %v558 = vmax.f32 %v347, 0.0
    %v559 = vmax.f32 %v352, 0.0
    %v560 = vmax.f32 %v357, 0.0
    %v561 = vmax.f32 %v362, 0.0
    %v562 = vmax.f32 %v367, 0.0
    %v563 = vmax.f32 %v372, 0.0
    %v564 = vmax.f32 %v377, 0.0
    %v565 = vmax.f32 %v382, 0.0
    %v566 = vmax.f32 %v387, 0.0
    %v567 = vmax.f32 %v392, 0.0
    %v568 = vmax.f32 %v397, 0.0
    %v569 = vmax.f32 %v402, 0.0
    %v570 = vmax.f32 %v407, 0.0
    %v571 = vmax.f32 %v412, 0.0
    %v572 = vmax.f32 %v417, 0.0
    %v573 = vmax.f32 %v422, 0.0
    %v574 = vmax.f32 %v427, 0.0
    %v575 = vmax.f32 %v432, 0.0
    %v576 = vmax.f32 %v437, 0.0
    %v577 = vmax.f32 %v442, 0.0
    %v578 = vmax.f32 %v447, 0.0
    %v579 = vmax.f32 %v452, 0.0
    %v580 = vmax.f32 %v457, 0.0
    %v581 = vmax.f32 %v462, 0.0
    %v582 = vmax.f32 %v467, 0.0
    %v583 = vmax.f32 %v472, 0.0
    %v584 = vmax.f32 %v477, 0.0
    %v585 = vmax.f32 %v482, 0.0
    %v586 = vmax.f32 %v487, 0.0
    %v587 = vmax.f32 %v492, 0.0
    %v588 = vmax.f32 %v497, 0.0
    %v589 = vmax.f32 %v502, 0.0
    %v590 = vmax.f32 %v507, 0.0
    %v591 = vmax.f32 %v512, 0.0
    %v592 = vmax.f32 %v517, 0.0
    %v593 = vmax.f32 %v522, 0.0
    %v594 = vmax.f32 %v527, 0.0
    %v595 = vmax.f32 %v532, 0.0
    %v596 = vmax.f32 %v537, 0.0
    %v597 = vmax.f32 %v542, 0.0
    %v598 = vmax.f32 %v547, 0.0
    %v599 = vld [vmem:[%s2] sm:$0xff]
    %v601 = vcombine.high %v599, %v599
    %v603 = vunpack.c.l.s4 1983009808
    %v604 = vunpack.c.0.s8 %v603
    %v605 = vlaneseq
    %v606 = vshrl.u32 %v605, 7
    %v607 = vsub.s32 %v604, %v606
    %v608 = vrot.slane %v599, %v607
    %v610 = vunpack.c.l.s4 1983009808
    %v611 = vunpack.c.0.s8 %v610
    %v612 = vlaneseq
    %v613 = vshrl.u32 %v612, 7
    %v614 = vsub.s32 %v611, %v613
    %v615 = vrot.slane %v601, %v614
    %v616 = vcombine.high %v608, %v608
    %v617 = vcombine.high %v615, %v615
    %vm621 = vcmask 64512
    %v622 = vsel %vm621, %v617, 0
    %624 = vmatprep.subr.mxu0 0.0
    %625 = vmatpush1.msra.mxu0 %v550
    %626 = vmatprep.subr.mxu0 0.0
    %627 = vmatpush1.msra.mxu0 %v551
    %628 = vmatprep.subr.mxu0 0.0
    %629 = vmatpush1.msra.mxu0 %v552
    %630 = vmatprep.subr.mxu0 0.0
    %631 = vmatpush1.msra.mxu0 %v553
    %632 = vmatprep.subr.mxu0 0.0
    %633 = vmatpush1.msra.mxu0 %v554
    %634 = vmatprep.subr.mxu0 0.0
    %635 = vmatpush1.msra.mxu0 %v555
    %636 = vmatprep.subr.mxu0 0.0
    %637 = vmatpush1.msra.mxu0 %v556
    %638 = vmatprep.subr.mxu0 0.0
    %639 = vmatpush1.msra.mxu0 %v557
    %640 = vmatprep.subr.mxu0 0.0
    %641 = vmatpush1.msra.mxu0 %v558
    %642 = vmatprep.subr.mxu0 0.0
    %643 = vmatpush1.msra.mxu0 %v559
    %644 = vmatprep.subr.mxu0 0.0
    %645 = vmatpush1.msra.mxu0 %v560
    %646 = vmatprep.subr.mxu0 0.0
    %647 = vmatpush1.msra.mxu0 %v561
    %648 = vmatprep.subr.mxu0 0.0
    %649 = vmatpush1.msra.mxu0 %v562
    %650 = vmatprep.subr.mxu0 0.0
    %651 = vmatpush1.msra.mxu0 %v563
    %652 = vmatprep.subr.mxu0 0.0
    %653 = vmatpush1.msra.mxu0 %v564
    %654 = vmatprep.subr.mxu0 0.0
    %655 = vmatpush1.msra.mxu0 %v565
    %656 = vmatprep.subr.mxu0 0.0
    %657 = vmatpush1.msra.mxu0 %v566
    %658 = vmatprep.subr.mxu0 0.0
    %659 = vmatpush1.msra.mxu0 %v567
    %660 = vmatprep.subr.mxu0 0.0
    %661 = vmatpush1.msra.mxu0 %v568
    %662 = vmatprep.subr.mxu0 0.0
    %663 = vmatpush1.msra.mxu0 %v569
    %664 = vmatprep.subr.mxu0 0.0
    %665 = vmatpush1.msra.mxu0 %v570
    %666 = vmatprep.subr.mxu0 0.0
    %667 = vmatpush1.msra.mxu0 %v571
    %668 = vmatprep.subr.mxu0 0.0
    %669 = vmatpush1.msra.mxu0 %v572
    %670 = vmatprep.subr.mxu0 0.0
    %671 = vmatpush1.msra.mxu0 %v573
    %672 = vmatprep.subr.mxu0 0.0
    %673 = vmatpush1.msra.mxu0 %v574
    %674 = vmatprep.subr.mxu0 0.0
    %675 = vmatpush1.msra.mxu0 %v575
    %676 = vmatprep.subr.mxu0 0.0
    %677 = vmatpush1.msra.mxu0 %v576
    %678 = vmatprep.subr.mxu0 0.0
    %679 = vmatpush1.msra.mxu0 %v577
    %680 = vmatprep.subr.mxu0 0.0
    %681 = vmatpush1.msra.mxu0 %v578
    %682 = vmatprep.subr.mxu0 0.0
    %683 = vmatpush1.msra.mxu0 %v579
    %684 = vmatprep.subr.mxu0 0.0
    %685 = vmatpush1.msra.mxu0 %v580
    %686 = vmatprep.subr.mxu0 0.0
    %687 = vmatpush1.msra.mxu0 %v581
    %688 = vmatprep.mubr.f32.mxu0 %v616
    %689 = vmatmul.mubr.f32.gmra.mrb[0].mxu0 %v608
    %v690 = vpop.f32.mrb[0].mxu0
    %v691 = vadd.f32 0.0, %v690
    %v692 = vpop.f32.mrb[0].mxu0
    %693 = vdwg.mxu0
    %694 = vmatprep.subr.mxu0 0.0
    %695 = vmatpush1.msra.mxu0 %v582
    %696 = vmatprep.subr.mxu0 0.0
    %697 = vmatpush1.msra.mxu0 %v583
    %698 = vmatprep.subr.mxu0 0.0
    %699 = vmatpush1.msra.mxu0 %v584
    %700 = vmatprep.subr.mxu0 0.0
    %701 = vmatpush1.msra.mxu0 %v585
    %702 = vmatprep.subr.mxu0 0.0
    %703 = vmatpush1.msra.mxu0 %v586
    %704 = vmatprep.subr.mxu0 0.0
    %705 = vmatpush1.msra.mxu0 %v587
    %706 = vmatprep.subr.mxu0 0.0
    %707 = vmatpush1.msra.mxu0 %v588
    %708 = vmatprep.subr.mxu0 0.0
    %709 = vmatpush1.msra.mxu0 %v589
    %710 = vmatprep.subr.mxu0 0.0
    %711 = vmatpush1.msra.mxu0 %v590
    %712 = vmatprep.subr.mxu0 0.0
    %713 = vmatpush1.msra.mxu0 %v591
    %714 = vmatprep.subr.mxu0 0.0
    %715 = vmatpush1.msra.mxu0 %v592
    %716 = vmatprep.subr.mxu0 0.0
    %717 = vmatpush1.msra.mxu0 %v593
    %718 = vmatprep.subr.mxu0 0.0
    %719 = vmatpush1.msra.mxu0 %v594
    %720 = vmatprep.subr.mxu0 0.0
    %721 = vmatpush1.msra.mxu0 %v595
    %722 = vmatprep.subr.mxu0 0.0
    %723 = vmatpush1.msra.mxu0 %v596
    %724 = vmatprep.subr.mxu0 0.0
    %725 = vmatpush1.msra.mxu0 %v597
    %726 = vmatprep.subr.mxu0 0.0
    %727 = vmatpush1.msra.mxu0 %v598
    %728 = vmatprep.subr.mxu0 0.0
    %729 = vmatpush1.msra.mxu0 0.0
    %730 = vmatprep.subr.mxu0 0.0
    %731 = vmatpush1.msra.mxu0 0.0
    %732 = vmatprep.subr.mxu0 0.0
    %733 = vmatpush1.msra.mxu0 0.0
    %734 = vmatprep.subr.mxu0 0.0
    %735 = vmatpush1.msra.mxu0 0.0
    %736 = vmatprep.subr.mxu0 0.0
    %737 = vmatpush1.msra.mxu0 0.0
    %738 = vmatprep.subr.mxu0 0.0
    %739 = vmatpush1.msra.mxu0 0.0
    %740 = vmatprep.subr.mxu0 0.0
    %741 = vmatpush1.msra.mxu0 0.0
    %742 = vmatprep.subr.mxu0 0.0
    %743 = vmatpush1.msra.mxu0 0.0
    %744 = vmatprep.subr.mxu0 0.0
    %745 = vmatpush1.msra.mxu0 0.0
    %746 = vmatprep.subr.mxu0 0.0
    %747 = vmatpush1.msra.mxu0 0.0
    %748 = vmatprep.subr.mxu0 0.0
    %749 = vmatpush1.msra.mxu0 0.0
    %750 = vmatprep.subr.mxu0 0.0
    %751 = vmatpush1.msra.mxu0 0.0
    %752 = vmatprep.subr.mxu0 0.0
    %753 = vmatpush1.msra.mxu0 0.0
    %754 = vmatprep.subr.mxu0 0.0
    %755 = vmatpush1.msra.mxu0 0.0
    %756 = vmatprep.subr.mxu0 0.0
    %757 = vmatpush1.msra.mxu0 0.0
    %758 = vmatprep.mubr.f32.mxu0 %v622
    %759 = vmatmul.mubr.f32.gmra.mrb[0].mxu0 %v615
    %v760 = vpop.f32.mrb[0].mxu0
    %v761 = vadd.f32 %v691, %v760
    %v762 = vpop.f32.mrb[0].mxu0
    %763 = vdwg.mxu0
    %v764 = vmul.f32 %v761, %v761
    %vm765 = vcmask 254976
    %v766 = vsel %vm765, %v764, 0.0
    %767 = vadd.xlane.f32.xlu0 %v766
    %v768 = vpop.xlane.xlu0 %767
    %v769 = vld [vmem:[%s3] sm:$0xff]
    %v770 = vld [vmem:[%s3 + $0x8] sm:$0xff]
    %v771 = vld [vmem:[%s3 + $0x10] sm:$0xff]
    %v772 = vld [vmem:[%s3 + $0x18] sm:$0xff]
    %773 = vrot.lane.b32.xlu0 %v86, 96
    %v774 = vpop.permute.xlu0 %773
    %vm776 = vcmask 261120
    %v778 = vsel %vm776, %v761, 0
    %780 = vmatprep.subr.mxu0 0.0
    %781 = vmatpush1.msra.mxu0 %v769
    %782 = vmatprep.subr.mxu0 0.0
    %783 = vmatpush1.msra.mxu0 %v770
    %784 = vmatprep.subr.mxu0 0.0
    %785 = vmatpush1.msra.mxu0 %v771
    %786 = vmatprep.subr.mxu0 0.0
    %787 = vmatpush1.msra.mxu0 %v772
    %788 = vmatprep.subr.mxu0 0.0
    %789 = vmatpush1.msra.mxu0 0.0
    %790 = vmatprep.subr.mxu0 0.0
    %791 = vmatpush1.msra.mxu0 0.0
    %792 = vmatprep.subr.mxu0 0.0
    %793 = vmatpush1.msra.mxu0 0.0
    %794 = vmatprep.subr.mxu0 0.0
    %795 = vmatpush1.msra.mxu0 0.0
    %796 = vmatprep.subr.mxu0 0.0
    %797 = vmatpush1.msra.mxu0 0.0
    %798 = vmatprep.subr.mxu0 0.0
    %799 = vmatpush1.msra.mxu0 0.0
    %800 = vmatprep.subr.mxu0 0.0
    %801 = vmatpush1.msra.mxu0 0.0
    %802 = vmatprep.subr.mxu0 0.0
    %803 = vmatpush1.msra.mxu0 0.0
    %804 = vmatprep.subr.mxu0 0.0
    %805 = vmatpush1.msra.mxu0 0.0
    %806 = vmatprep.subr.mxu0 0.0
    %807 = vmatpush1.msra.mxu0 0.0
    %808 = vmatprep.subr.mxu0 0.0
    %809 = vmatpush1.msra.mxu0 0.0
    %810 = vmatprep.subr.mxu0 0.0
    %811 = vmatpush1.msra.mxu0 0.0
    %812 = vmatprep.subr.mxu0 0.0
    %813 = vmatpush1.msra.mxu0 0.0
    %814 = vmatprep.subr.mxu0 0.0
    %815 = vmatpush1.msra.mxu0 0.0
    %816 = vmatprep.subr.mxu0 0.0
    %817 = vmatpush1.msra.mxu0 0.0
    %818 = vmatprep.subr.mxu0 0.0
    %819 = vmatpush1.msra.mxu0 0.0
    %820 = vmatprep.subr.mxu0 0.0
    %821 = vmatpush1.msra.mxu0 0.0
    %822 = vmatprep.subr.mxu0 0.0
    %823 = vmatpush1.msra.mxu0 0.0
    %824 = vmatprep.subr.mxu0 0.0
    %825 = vmatpush1.msra.mxu0 0.0
    %826 = vmatprep.subr.mxu0 0.0
    %827 = vmatpush1.msra.mxu0 0.0
    %828 = vmatprep.subr.mxu0 0.0
    %829 = vmatpush1.msra.mxu0 0.0
    %830 = vmatprep.subr.mxu0 0.0
    %831 = vmatpush1.msra.mxu0 0.0
    %832 = vmatprep.subr.mxu0 0.0
    %833 = vmatpush1.msra.mxu0 0.0
    %834 = vmatprep.subr.mxu0 0.0
    %835 = vmatpush1.msra.mxu0 0.0
    %836 = vmatprep.subr.mxu0 0.0
    %837 = vmatpush1.msra.mxu0 0.0
    %838 = vmatprep.subr.mxu0 0.0
    %839 = vmatpush1.msra.mxu0 0.0
    %840 = vmatprep.subr.mxu0 0.0
    %841 = vmatpush1.msra.mxu0 0.0
    %842 = vmatprep.subr.mxu0 0.0
    %843 = vmatpush1.msra.mxu0 0.0
    %844 = vmatprep.mubr.f32.mxu0 0.0
    %845 = vmatmul.mubr.f32.gmra.mrb[0].mxu0 %v778
    %v846 = vpop.f32.mrb[0].mxu0
    %v847 = vadd.f32 %v774, %v846
    %v848 = vpop.f32.mrb[0].mxu0
    %849 = vdwg.mxu0
    %v850 = vmul.f32 %v768, 0.03125
    %v851 = vsub.f32 %v847, %v850
    %v852 = vmul.f32 %v851, 1.442695
    %v853 = vpow.pop %v852
    %v854 = vld [vmem:[%s4] sm:$0xff]
    %v855 = vld [vmem:[%s4 + $0x8] sm:$0xff]
    %856 = vrot.lane.b32.xlu0 %v86, 80
    %v857 = vpop.permute.xlu0 %856
    %vm859 = vcmask 130048
    %v861 = vsel %vm859, %v853, 0
    %863 = vmatprep.subr.mxu0 0.0
    %864 = vmatpush1.msra.mxu0 %v854
    %865 = vmatprep.subr.mxu0 0.0
    %866 = vmatpush1.msra.mxu0 %v855
    %867 = vmatprep.subr.mxu0 0.0
    %868 = vmatpush1.msra.mxu0 0.0
    %869 = vmatprep.subr.mxu0 0.0
    %870 = vmatpush1.msra.mxu0 0.0
    %871 = vmatprep.subr.mxu0 0.0
    %872 = vmatpush1.msra.mxu0 0.0
    %873 = vmatprep.subr.mxu0 0.0
    %874 = vmatpush1.msra.mxu0 0.0
    %875 = vmatprep.subr.mxu0 0.0
    %876 = vmatpush1.msra.mxu0 0.0
    %877 = vmatprep.subr.mxu0 0.0
    %878 = vmatpush1.msra.mxu0 0.0
    %879 = vmatprep.subr.mxu0 0.0
    %880 = vmatpush1.msra.mxu0 0.0
    %881 = vmatprep.subr.mxu0 0.0
    %882 = vmatpush1.msra.mxu0 0.0
    %883 = vmatprep.subr.mxu0 0.0
    %884 = vmatpush1.msra.mxu0 0.0
    %885 = vmatprep.subr.mxu0 0.0
    %886 = vmatpush1.msra.mxu0 0.0
    %887 = vmatprep.subr.mxu0 0.0
    %888 = vmatpush1.msra.mxu0 0.0
    %889 = vmatprep.subr.mxu0 0.0
    %890 = vmatpush1.msra.mxu0 0.0
    %891 = vmatprep.subr.mxu0 0.0
    %892 = vmatpush1.msra.mxu0 0.0
    %893 = vmatprep.subr.mxu0 0.0
    %894 = vmatpush1.msra.mxu0 0.0
    %895 = vmatprep.subr.mxu0 0.0
    %896 = vmatpush1.msra.mxu0 0.0
    %897 = vmatprep.subr.mxu0 0.0
    %898 = vmatpush1.msra.mxu0 0.0
    %899 = vmatprep.subr.mxu0 0.0
    %900 = vmatpush1.msra.mxu0 0.0
    %901 = vmatprep.subr.mxu0 0.0
    %902 = vmatpush1.msra.mxu0 0.0
    %903 = vmatprep.subr.mxu0 0.0
    %904 = vmatpush1.msra.mxu0 0.0
    %905 = vmatprep.subr.mxu0 0.0
    %906 = vmatpush1.msra.mxu0 0.0
    %907 = vmatprep.subr.mxu0 0.0
    %908 = vmatpush1.msra.mxu0 0.0
    %909 = vmatprep.subr.mxu0 0.0
    %910 = vmatpush1.msra.mxu0 0.0
    %911 = vmatprep.subr.mxu0 0.0
    %912 = vmatpush1.msra.mxu0 0.0
    %913 = vmatprep.subr.mxu0 0.0
    %914 = vmatpush1.msra.mxu0 0.0
    %915 = vmatprep.subr.mxu0 0.0
    %916 = vmatpush1.msra.mxu0 0.0
    %917 = vmatprep.subr.mxu0 0.0
    %918 = vmatpush1.msra.mxu0 0.0
    %919 = vmatprep.subr.mxu0 0.0
    %920 = vmatpush1.msra.mxu0 0.0
    %921 = vmatprep.subr.mxu0 0.0
    %922 = vmatpush1.msra.mxu0 0.0
    %923 = vmatprep.subr.mxu0 0.0
    %924 = vmatpush1.msra.mxu0 0.0
    %925 = vmatprep.subr.mxu0 0.0
    %926 = vmatpush1.msra.mxu0 0.0
    %927 = vmatprep.mubr.f32.mxu0 0.0
    %928 = vmatmul.mubr.f32.gmra.mrb[0].mxu0 %v861
    %v929 = vpop.f32.mrb[0].mxu0
    %v930 = vadd.f32 %v857, %v929
    %v931 = vpop.f32.mrb[0].mxu0
    %932 = vdwg.mxu0
    %v933 = vsub.f32 0.0, %v930
    %vm934 = vcmp.ge.f32.partialorder %v930, 0.0
    %v935 = vsel %vm934, 1, 0
    %v936 = vcvt.s32.f32 %v935
    %v937 = vld [vmem:[%s5] sm:$0x3f]
    %938 = vrot.lane.b32.xlu0 %v86, 70
    %v939 = vpop.permute.xlu0 %938
    %vm941 = vcmask 48128
    %v943 = vsel %vm941, %v936, 0
    %vm945 = vcmask 1045504
    %v947 = vsel %vm945, %v937, 0
    %949 = vmatprep.subr.mxu0 0.0
    %950 = vmatpush1.msra.mxu0 %v947
    %951 = vmatprep.subr.mxu0 0.0
    %952 = vmatpush1.msra.mxu0 0.0
    %953 = vmatprep.subr.mxu0 0.0
    %954 = vmatpush1.msra.mxu0 0.0
    %955 = vmatprep.subr.mxu0 0.0
    %956 = vmatpush1.msra.mxu0 0.0
    %957 = vmatprep.subr.mxu0 0.0
    %958 = vmatpush1.msra.mxu0 0.0
    %959 = vmatprep.subr.mxu0 0.0
    %960 = vmatpush1.msra.mxu0 0.0
    %961 = vmatprep.subr.mxu0 0.0
    %962 = vmatpush1.msra.mxu0 0.0
    %963 = vmatprep.subr.mxu0 0.0
    %964 = vmatpush1.msra.mxu0 0.0
    %965 = vmatprep.subr.mxu0 0.0
    %966 = vmatpush1.msra.mxu0 0.0
    %967 = vmatprep.subr.mxu0 0.0
    %968 = vmatpush1.msra.mxu0 0.0
    %969 = vmatprep.subr.mxu0 0.0
    %970 = vmatpush1.msra.mxu0 0.0
    %971 = vmatprep.subr.mxu0 0.0
    %972 = vmatpush1.msra.mxu0 0.0
    %973 = vmatprep.subr.mxu0 0.0
    %974 = vmatpush1.msra.mxu0 0.0
    %975 = vmatprep.subr.mxu0 0.0
    %976 = vmatpush1.msra.mxu0 0.0
    %977 = vmatprep.subr.mxu0 0.0
    %978 = vmatpush1.msra.mxu0 0.0
    %979 = vmatprep.subr.mxu0 0.0
    %980 = vmatpush1.msra.mxu0 0.0
    %981 = vmatprep.subr.mxu0 0.0
    %982 = vmatpush1.msra.mxu0 0.0
    %983 = vmatprep.subr.mxu0 0.0
    %984 = vmatpush1.msra.mxu0 0.0
    %985 = vmatprep.subr.mxu0 0.0
    %986 = vmatpush1.msra.mxu0 0.0
    %987 = vmatprep.subr.mxu0 0.0
    %988 = vmatpush1.msra.mxu0 0.0
    %989 = vmatprep.subr.mxu0 0.0
    %990 = vmatpush1.msra.mxu0 0.0
    %991 = vmatprep.subr.mxu0 0.0
    %992 = vmatpush1.msra.mxu0 0.0
    %993 = vmatprep.subr.mxu0 0.0
    %994 = vmatpush1.msra.mxu0 0.0
    %995 = vmatprep.subr.mxu0 0.0
    %996 = vmatpush1.msra.mxu0 0.0
    %997 = vmatprep.subr.mxu0 0.0
    %998 = vmatpush1.msra.mxu0 0.0
    %999 = vmatprep.subr.mxu0 0.0
    %1000 = vmatpush1.msra.mxu0 0.0
    %1001 = vmatprep.subr.mxu0 0.0
    %1002 = vmatpush1.msra.mxu0 0.0
    %1003 = vmatprep.subr.mxu0 0.0
    %1004 = vmatpush1.msra.mxu0 0.0
    %1005 = vmatprep.subr.mxu0 0.0
    %1006 = vmatpush1.msra.mxu0 0.0
    %1007 = vmatprep.subr.mxu0 0.0
    %1008 = vmatpush1.msra.mxu0 0.0
    %1009 = vmatprep.subr.mxu0 0.0
    %1010 = vmatpush1.msra.mxu0 0.0
    %1011 = vmatprep.subr.mxu0 0.0
    %1012 = vmatpush1.msra.mxu0 0.0
    %1013 = vmatprep.mubr.f32.mxu0 0.0
    %1014 = vmatmul.mubr.f32.gmra.mrb[0].mxu0 %v943
    %v1015 = vpop.f32.mrb[0].mxu0
    %v1016 = vadd.f32 %v939, %v1015
    %v1017 = vpop.f32.mrb[0].mxu0
    %1018 = vdwg.mxu0
    %v1019 = vand.u32 2147483647, %v933
    %v1020 = vadd.f32 %v1019, 1.0
    %v1021 = vmul.f32 %v1020, 3.0
    %v1022 = vrcp.pop %v1021
    %v1023 = vmul.f32 %v933, %v1022
    %1025 = vrot.lane.b32.xlu0 %v1023, 122
    %v1026 = vpop.permute.xlu0 %1025
    %v1028 = vadd.f32 %v1016, %v1026
    %vm1029 = vcmask 25600
    %1030 = vst.msk [vmem:[#allocation2] sm:$0x3] %vm1029, %v1028
    // Predicated region
    $region30: #{tpu_custom_call.1} parent=1 // pred_check
      _
    $region31: #{tpu_custom_call.1} parent=1 // pred_check_branch
      %1032 = sbr.rel (0) target = $region33
    $region32: #{tpu_custom_call.1} parent=1 // pred_region
      %s1034 = ssub.s32 32, 32
      %1035 = vsyncadd [#allocation3], %s1034
      %s1037 = sshll.u32 [#allocation2], 4
      %s1038 = int_to_ptr.vmem [resolvable:$true] %s1037
      %1040 = dma.vmem_to_hbm [thread:$0]  %s1038, 32, %s7, [#allocation3]
    $region33: #{tpu_custom_call.1} parent=1 // pred_fallthru
      _
    // Predicated region
    $region34: #{tpu_custom_call.1} parent=1 // pred_check
      _
    $region35: #{tpu_custom_call.1} parent=1 // pred_check_branch
      %1042 = sbr.rel (0) target = $region37
    $region36: #{tpu_custom_call.1} parent=1 // pred_region
      %1043 = dma.done [#allocation3], 32
    $region37: #{tpu_custom_call.1} parent=1 // pred_fallthru
      _
    %1044 = vsyncpa [#allocation3], 1

</llo_original>
